<compile_context>
chip_gen: v6e
topology: v6e:2x2x1
jax: 0.10.0
libtpu: 0.0.40
codegen_flags: <defaults>
</compile_context>

<pallas_src>
import functools

import jax
import jax.numpy as jnp
from jax.experimental import pallas as pl
from jax.experimental.pallas import tpu as pltpu

LN_EPS = 1e-12  # DistilBERT LayerNorm eps


# ------------------------------ small helpers --------------------------------

def _row_tile(m, target=256):
    """Largest multiple-of-8 row tile <= target that divides m; prefers >= 2
    grid steps when m itself is small so the pipeline is actually exercised."""
    if m <= target:
        half = m // 2
        if half >= 8 and half % 8 == 0 and m % half == 0:
            return half
        return m
    t = target
    while t >= 8:
        if m % t == 0:
            return t
        t -= 8
    return m


def _parallel(n_axes=1):
    return pltpu.CompilerParams(dimension_semantics=("parallel",) * n_axes)


def _layernorm_f32(x, g, b):
    mu = jnp.mean(x, axis=-1, keepdims=True)
    var = jnp.mean(jnp.square(x - mu), axis=-1, keepdims=True)
    return (x - mu) * jax.lax.rsqrt(var + LN_EPS) * g + b


# ----------------------------- Pallas kernels --------------------------------

def _embed_ln_kernel(word_ref, pos_ref, g_ref, b_ref, o_ref):
    # word tile [S, H] + pos [S, H] (same block for every batch) -> LayerNorm.
    x = word_ref[...] + pos_ref[...]
    o_ref[...] = _layernorm_f32(x, g_ref[...], b_ref[...])


def embed_layernorm(word_flat, pos, gamma, beta, *, batch, seq):
    m, h = word_flat.shape
    return pl.pallas_call(
        _embed_ln_kernel,
        grid=(batch,),
        in_specs=[
            pl.BlockSpec((seq, h), lambda b: (b, 0)),
            pl.BlockSpec((seq, h), lambda b: (0, 0)),   # pos broadcast over batch
            pl.BlockSpec((1, h), lambda b: (0, 0)),
            pl.BlockSpec((1, h), lambda b: (0, 0)),
        ],
        out_specs=pl.BlockSpec((seq, h), lambda b: (b, 0)),
        out_shape=jax.ShapeDtypeStruct((m, h), jnp.float32),
        compiler_params=_parallel(),
    )(word_flat, pos, gamma.reshape(1, h), beta.reshape(1, h))


def _linear_kernel(x_ref, w_ref, b_ref, o_ref, *, activation):
    x = x_ref[...].astype(jnp.bfloat16)                 # bf16 MXU operands
    y = jnp.dot(x, w_ref[...], preferred_element_type=jnp.float32) + b_ref[...]
    if activation == "gelu":
        # TODO(synk): DistilBERT uses exact (erf) GELU; tanh approximation is
        # used here for a Mosaic-friendly lowering (difference ~1e-3).
        y = jax.nn.gelu(y, approximate=True)
    o_ref[...] = y


def linear(x, w, b, activation="none"):
    m, k = x.shape
    n = w.shape[1]
    tm = _row_tile(m)
    return pl.pallas_call(
        functools.partial(_linear_kernel, activation=activation),
        grid=(m // tm,),
        in_specs=[
            pl.BlockSpec((tm, k), lambda i: (i, 0)),
            pl.BlockSpec((k, n), lambda i: (0, 0)),     # weight resident across row tiles
            pl.BlockSpec((1, n), lambda i: (0, 0)),
        ],
        out_specs=pl.BlockSpec((tm, n), lambda i: (i, 0)),
        out_shape=jax.ShapeDtypeStruct((m, n), jnp.float32),
        compiler_params=_parallel(),
    )(x, w, b.reshape(1, n))


def _linear_add_ln_kernel(x_ref, w_ref, b_ref, r_ref, g_ref, be_ref, o_ref):
    # y = x @ W + b + residual ; LayerNorm — fused epilogue (no extra HBM pass).
    x = x_ref[...].astype(jnp.bfloat16)
    y = jnp.dot(x, w_ref[...], preferred_element_type=jnp.float32)
    y = y + b_ref[...] + r_ref[...]
    o_ref[...] = _layernorm_f32(y, g_ref[...], be_ref[...])


def linear_add_layernorm(x, w, b, res, gamma, beta):
    m, k = x.shape
    n = w.shape[1]
    tm = _row_tile(m)
    return pl.pallas_call(
        _linear_add_ln_kernel,
        grid=(m // tm,),
        in_specs=[
            pl.BlockSpec((tm, k), lambda i: (i, 0)),
            pl.BlockSpec((k, n), lambda i: (0, 0)),
            pl.BlockSpec((1, n), lambda i: (0, 0)),
            pl.BlockSpec((tm, n), lambda i: (i, 0)),
            pl.BlockSpec((1, n), lambda i: (0, 0)),
            pl.BlockSpec((1, n), lambda i: (0, 0)),
        ],
        out_specs=pl.BlockSpec((tm, n), lambda i: (i, 0)),
        out_shape=jax.ShapeDtypeStruct((m, n), jnp.float32),
        compiler_params=_parallel(),
    )(x, w, b.reshape(1, n), res, gamma.reshape(1, n), beta.reshape(1, n))


def _ffn_kernel(x_ref, w1_ref, b1_ref, w2_ref, b2_ref, g_ref, be_ref, o_ref):
    # Full FFN fused: the GELU intermediate stays tile-resident in VMEM.
    x = x_ref[...]
    h = jnp.dot(x.astype(jnp.bfloat16), w1_ref[...],
                preferred_element_type=jnp.float32) + b1_ref[...]
    h = jax.nn.gelu(h, approximate=True)
    y = jnp.dot(h.astype(jnp.bfloat16), w2_ref[...],
                preferred_element_type=jnp.float32) + b2_ref[...] + x
    o_ref[...] = _layernorm_f32(y, g_ref[...], be_ref[...])


def ffn(x, w1, b1, w2, b2, gamma, beta):
    m, h = x.shape
    f = w1.shape[1]
    tm = _row_tile(m)
    return pl.pallas_call(
        _ffn_kernel,
        grid=(m // tm,),
        in_specs=[
            pl.BlockSpec((tm, h), lambda i: (i, 0)),
            pl.BlockSpec((h, f), lambda i: (0, 0)),
            pl.BlockSpec((1, f), lambda i: (0, 0)),
            pl.BlockSpec((f, h), lambda i: (0, 0)),
            pl.BlockSpec((1, h), lambda i: (0, 0)),
            pl.BlockSpec((1, h), lambda i: (0, 0)),
            pl.BlockSpec((1, h), lambda i: (0, 0)),
        ],
        out_specs=pl.BlockSpec((tm, h), lambda i: (i, 0)),
        out_shape=jax.ShapeDtypeStruct((m, h), jnp.float32),
        compiler_params=_parallel(),
    )(x, w1, b1.reshape(1, f), w2, b2.reshape(1, h),
      gamma.reshape(1, h), beta.reshape(1, h))


def _attention_kernel(qkv_ref, mask_ref, o_ref, *, n_heads, head_dim, scale):
    qkv = qkv_ref[...]                                  # [S, 3H] f32
    mask = mask_ref[...]                                # [1, S] additive key mask
    hidden = n_heads * head_dim
    ctx_heads = []
    for hi in range(n_heads):                           # static head loop
        q = qkv[:, hi * head_dim:(hi + 1) * head_dim].astype(jnp.bfloat16)
        k = qkv[:, hidden + hi * head_dim:hidden + (hi + 1) * head_dim].astype(jnp.bfloat16)
        v = qkv[:, 2 * hidden + hi * head_dim:2 * hidden + (hi + 1) * head_dim].astype(jnp.bfloat16)
        # q·kᵀ via dot_general (contract last dims) — no in-kernel transpose.
        scores = jax.lax.dot_general(q, k, (((1,), (1,)), ((), ())),
                                     preferred_element_type=jnp.float32) * scale
        scores = scores + mask
        scores = scores - jnp.max(scores, axis=-1, keepdims=True)
        p = jnp.exp(scores)
        p = p * pl.reciprocal(jnp.sum(p, axis=-1, keepdims=True), approx=True)
        ctx_heads.append(jnp.dot(p.astype(jnp.bfloat16), v,
                                 preferred_element_type=jnp.float32))
    # Single lane-dense [S, H] store (heads concatenated along the lane dim).
    o_ref[...] = jnp.concatenate(ctx_heads, axis=-1)


def attention(qkv, mask_add, *, n_heads, head_dim, seq):
    bsz = mask_add.shape[0]
    hidden = n_heads * head_dim
    return pl.pallas_call(
        functools.partial(_attention_kernel, n_heads=n_heads, head_dim=head_dim,
                          scale=1.0 / (head_dim ** 0.5)),
        grid=(bsz,),
        in_specs=[
            pl.BlockSpec((seq, 3 * hidden), lambda b: (b, 0)),
            pl.BlockSpec((None, 1, seq), lambda b: (b, 0, 0)),
        ],
        out_specs=pl.BlockSpec((seq, hidden), lambda b: (b, 0)),
        out_shape=jax.ShapeDtypeStruct((bsz * seq, hidden), jnp.float32),
        compiler_params=_parallel(),
    )(qkv, mask_add)


def _meanpool_fc_kernel(h_ref, w_ref, b_ref, o_ref):
    pooled = jnp.mean(h_ref[...], axis=1)               # torch: .mean(dim=1)
    o_ref[...] = jnp.dot(pooled.astype(jnp.bfloat16), w_ref[...],
                         preferred_element_type=jnp.float32) + b_ref[...]


def meanpool_fc(hidden_states, w, b):
    bsz, s, h = hidden_states.shape
    n = w.shape[1]
    # Tiny epilogue ([B, C] output) — a single block is the right tiling here.
    return pl.pallas_call(
        _meanpool_fc_kernel,
        grid=(1,),
        in_specs=[
            pl.BlockSpec((bsz, s, h), lambda i: (0, 0, 0)),
            pl.BlockSpec((h, n), lambda i: (0, 0)),
            pl.BlockSpec((1, n), lambda i: (0, 0)),
        ],
        out_specs=pl.BlockSpec((bsz, n), lambda i: (0, 0)),
        out_shape=jax.ShapeDtypeStruct((bsz, n), jnp.float32),
    )(hidden_states, w, b.reshape(1, n))


# ------------------------------- parameters ----------------------------------

def init_params(key, *, vocab_size, max_position, hidden, n_heads, n_layers,
                ffn_dim, n_classes):
    keys = jax.random.split(key, 4 + n_layers)

    def dense(k, shape):
        # weights stored bf16 so the MXU consumes them natively
        return (0.02 * jax.random.normal(k, shape, jnp.float32)).astype(jnp.bfloat16)

    params = {
        "n_heads": n_heads,
        "word_emb": 0.02 * jax.random.normal(keys[0], (vocab_size, hidden), jnp.float32),
        "pos_emb": 0.02 * jax.random.normal(keys[1], (max_position, hidden), jnp.float32),
        "emb_ln_g": jnp.ones((hidden,), jnp.float32),
        "emb_ln_b": jnp.zeros((hidden,), jnp.float32),
        "fc_w": dense(keys[2], (hidden, n_classes)),
        "fc_b": jnp.zeros((n_classes,), jnp.float32),
        "layers": [],
    }
    for li in range(n_layers):
        lk = jax.random.split(keys[4 + li], 4)
        params["layers"].append({
            "wqkv": dense(lk[0], (hidden, 3 * hidden)),          # fused Q|K|V
            "bqkv": jnp.zeros((3 * hidden,), jnp.float32),
            "wo": dense(lk[1], (hidden, hidden)),
            "bo": jnp.zeros((hidden,), jnp.float32),
            "ln1_g": jnp.ones((hidden,), jnp.float32),
            "ln1_b": jnp.zeros((hidden,), jnp.float32),
            "w1": dense(lk[2], (hidden, ffn_dim)),
            "b1": jnp.zeros((ffn_dim,), jnp.float32),
            "w2": dense(lk[3], (ffn_dim, hidden)),
            "b2": jnp.zeros((hidden,), jnp.float32),
            "ln2_g": jnp.ones((hidden,), jnp.float32),
            "ln2_b": jnp.zeros((hidden,), jnp.float32),
        })
    return params


# --------------------------------- forward -----------------------------------

def intent_classifier_forward(params, input_ids, attention_mask):
    bsz, s = input_ids.shape
    hidden = params["word_emb"].shape[1]
    n_heads = params["n_heads"]
    dh = hidden // n_heads

    # Embedding gather is plain-JAX glue; pos add + LN fused in a kernel
    # (pos broadcast over batch via index_map — no [B,S,H] materialization).
    word = jnp.take(params["word_emb"], input_ids, axis=0).reshape(bsz * s, hidden)
    x = embed_layernorm(word, params["pos_emb"][:s],
                        params["emb_ln_g"], params["emb_ln_b"],
                        batch=bsz, seq=s)                                  # [B*S, H]

    mask_add = ((1.0 - attention_mask.astype(jnp.float32)) * -1e9).reshape(bsz, 1, s)

    for lyr in params["layers"]:
        qkv = linear(x, lyr["wqkv"], lyr["bqkv"])                          # [B*S, 3H]
        ctx = attention(qkv, mask_add, n_heads=n_heads, head_dim=dh, seq=s)  # [B*S, H]
        x = linear_add_layernorm(ctx, lyr["wo"], lyr["bo"], x,
                                 lyr["ln1_g"], lyr["ln1_b"])               # post-LN
        x = ffn(x, lyr["w1"], lyr["b1"], lyr["w2"], lyr["b2"],
                lyr["ln2_g"], lyr["ln2_b"])

    last_hidden_state = x.reshape(bsz, s, hidden)
    return meanpool_fc(last_hidden_state, params["fc_w"], params["fc_b"])  # [B, C]


# ----------------------------- pure-JAX reference ------------------------------

def _ref_layernorm(x, g, b):
    mu = x.mean(-1, keepdims=True)
    var = ((x - mu) ** 2).mean(-1, keepdims=True)
    return (x - mu) * jax.lax.rsqrt(var + LN_EPS) * g + b


def reference_forward(params, input_ids, attention_mask):
    bsz, s = input_ids.shape
    hidden = params["word_emb"].shape[1]
    n_heads = params["n_heads"]
    dh = hidden // n_heads
    x = jnp.take(params["word_emb"], input_ids, axis=0) + params["pos_emb"][:s][None]
    x = _ref_layernorm(x, params["emb_ln_g"], params["emb_ln_b"])
    mask_add = ((1.0 - attention_mask.astype(jnp.float32)) * -1e9)[:, None, None, :]
    for lyr in params["layers"]:
        qkv = x @ lyr["wqkv"].astype(jnp.float32) + lyr["bqkv"]
        q, k, v = jnp.split(qkv, 3, axis=-1)

        def heads(t):
            return t.reshape(bsz, s, n_heads, dh).transpose(0, 2, 1, 3)

        q, k, v = heads(q), heads(k), heads(v)
        scores = jnp.einsum("bhqd,bhkd->bhqk", q, k) / (dh ** 0.5) + mask_add
        p = jax.nn.softmax(scores, axis=-1)
        ctx = jnp.einsum("bhqk,bhkd->bhqd", p, v).transpose(0, 2, 1, 3).reshape(bsz, s, hidden)
        x = _ref_layernorm(ctx @ lyr["wo"].astype(jnp.float32) + lyr["bo"] + x,
                           lyr["ln1_g"], lyr["ln1_b"])
        h = jax.nn.gelu(x @ lyr["w1"].astype(jnp.float32) + lyr["b1"], approximate=True)
        x = _ref_layernorm(h @ lyr["w2"].astype(jnp.float32) + lyr["b2"] + x,
                           lyr["ln2_g"], lyr["ln2_b"])
    pooled = x.mean(axis=1)
    return pooled @ params["fc_w"].astype(jnp.float32) + params["fc_b"]


# ----------------------------------- main -------------------------------------

if __name__ == "__main__":
    B, S = 2, 8
    VOCAB, MAXPOS, HIDDEN, HEADS, LAYERS, FFN, CLASSES = 100, 16, 32, 4, 2, 64, 5

    key = jax.random.PRNGKey(0)
    pkey, ikey = jax.random.split(key)
    params = init_params(pkey, vocab_size=VOCAB, max_position=MAXPOS,
                         hidden=HIDDEN, n_heads=HEADS, n_layers=LAYERS,
                         ffn_dim=FFN, n_classes=CLASSES)

    input_ids = jax.random.randint(ikey, (B, S), 0, VOCAB, dtype=jnp.int32)
    attention_mask = jnp.array([[1, 1, 1, 1, 1, 1, 0, 0],
                                [1, 1, 1, 1, 1, 1, 1, 1]], dtype=jnp.int32)

    logits = intent_classifier_forward(params, input_ids, attention_mask)
    logits = jax.block_until_ready(logits)

    ref = reference_forward(params, input_ids, attention_mask)

    assert logits.shape == (B, CLASSES), logits.shape
    assert bool(jnp.all(jnp.isfinite(logits)))
    # bf16 matmul operands + approx softmax reciprocal vs f32 reference.
    assert bool(jnp.allclose(logits, ref, atol=1e-2, rtol=1e-2)), (logits, ref)
    print("KERNEL_OK")
</pallas_src>

<mosaic_0001>
module attributes {stable_mosaic.version = 11 : i64} {
  func.func @_embed_ln_kernel(%arg0: i32, %arg1: memref<8x32xf32, #tpu.memory_space<vmem>>, %arg2: memref<8x32xf32, #tpu.memory_space<vmem>>, %arg3: memref<1x32xf32, #tpu.memory_space<vmem>>, %arg4: memref<1x32xf32, #tpu.memory_space<vmem>>, %arg5: memref<8x32xf32, #tpu.memory_space<vmem>>) attributes {dimension_semantics = [#tpu.dimension_semantics<parallel>], iteration_bounds = array<i64: 2>, scalar_prefetch = 0 : i64, scratch_operands = 0 : i64, tpu.core_type = #tpu.core_type<tc>, window_params = [{transform_indices = @transform_0, window_bounds = array<i64: 8, 32>}, {pipeline_mode = #tpu.pipeline_mode<synchronous>, transform_indices = @transform_1, window_bounds = array<i64: 8, 32>}, {pipeline_mode = #tpu.pipeline_mode<synchronous>, transform_indices = @transform_2, window_bounds = array<i64: 1, 32>}, {pipeline_mode = #tpu.pipeline_mode<synchronous>, transform_indices = @transform_3, window_bounds = array<i64: 1, 32>}, {transform_indices = @transform_4, window_bounds = array<i64: 8, 32>}]} {
    %c0 = arith.constant 0 : index
    %c0_0 = arith.constant 0 : index
    %0 = vector.load %arg1[%c0, %c0_0] : memref<8x32xf32, #tpu.memory_space<vmem>>, vector<8x32xf32>
    %c0_1 = arith.constant 0 : index
    %c0_2 = arith.constant 0 : index
    %1 = vector.load %arg2[%c0_1, %c0_2] : memref<8x32xf32, #tpu.memory_space<vmem>>, vector<8x32xf32>
    %2 = arith.addf %0, %1 : vector<8x32xf32>
    %c0_3 = arith.constant 0 : index
    %c0_4 = arith.constant 0 : index
    %3 = vector.load %arg3[%c0_3, %c0_4] : memref<1x32xf32, #tpu.memory_space<vmem>>, vector<1x32xf32>
    %c0_5 = arith.constant 0 : index
    %c0_6 = arith.constant 0 : index
    %4 = vector.load %arg4[%c0_5, %c0_6] : memref<1x32xf32, #tpu.memory_space<vmem>>, vector<1x32xf32>
    %cst = arith.constant dense<0.000000e+00> : vector<8xf32>
    %5 = vector.multi_reduction <add>, %2, %cst [1] : vector<8x32xf32> to vector<8xf32>
    %6 = vector.shape_cast %5 : vector<8xf32> to vector<8x1xf32>
    %cst_7 = arith.constant 3.200000e+01 : f32
    %7 = vector.broadcast %cst_7 : f32 to vector<8x1xf32>
    %8 = arith.divf %6, %7 : vector<8x1xf32>
    %9 = vector.broadcast %8 : vector<8x1xf32> to vector<8x32xf32>
    %10 = arith.subf %2, %9 : vector<8x32xf32>
    %11 = arith.mulf %10, %10 : vector<8x32xf32>
    %cst_8 = arith.constant dense<0.000000e+00> : vector<8xf32>
    %12 = vector.multi_reduction <add>, %11, %cst_8 [1] : vector<8x32xf32> to vector<8xf32>
    %13 = vector.shape_cast %12 : vector<8xf32> to vector<8x1xf32>
    %cst_9 = arith.constant 3.200000e+01 : f32
    %14 = vector.broadcast %cst_9 : f32 to vector<8x1xf32>
    %15 = arith.divf %13, %14 : vector<8x1xf32>
    %16 = vector.broadcast %8 : vector<8x1xf32> to vector<8x32xf32>
    %17 = arith.subf %2, %16 : vector<8x32xf32>
    %cst_10 = arith.constant 9.99999996E-13 : f32
    %18 = vector.broadcast %cst_10 : f32 to vector<8x1xf32>
    %19 = arith.addf %15, %18 : vector<8x1xf32>
    %20 = math.rsqrt %19 : vector<8x1xf32>
    %21 = vector.broadcast %20 : vector<8x1xf32> to vector<8x32xf32>
    %22 = arith.mulf %17, %21 : vector<8x32xf32>
    %23 = vector.broadcast %3 : vector<1x32xf32> to vector<8x32xf32>
    %24 = arith.mulf %22, %23 : vector<8x32xf32>
    %25 = vector.broadcast %4 : vector<1x32xf32> to vector<8x32xf32>
    %26 = arith.addf %24, %25 : vector<8x32xf32>
    %c0_11 = arith.constant 0 : index
    %c0_12 = arith.constant 0 : index
    %27 = vector.load %arg5[%c0_11, %c0_12] : memref<8x32xf32, #tpu.memory_space<vmem>>, vector<8x32xf32>
    tpu.vector_store %arg5[%c0_11, %c0_12], %26 {strides = array<i32>} : memref<8x32xf32, #tpu.memory_space<vmem>>, vector<8x32xf32>,
    return
  }
  func.func @transform_0(%arg0: i32) -> (i32, i32) {
    %c0_i32 = arith.constant 0 : i32
    %c0_i32_0 = arith.constant 0 : i32
    return %arg0, %c0_i32 : i32, i32
  }
  func.func @transform_1(%arg0: i32) -> (i32, i32) {
    %c0_i32 = arith.constant 0 : i32
    %c0_i32_0 = arith.constant 0 : i32
    %c0_i32_1 = arith.constant 0 : i32
    return %c0_i32, %c0_i32_0 : i32, i32
  }
  func.func @transform_2(%arg0: i32) -> (i32, i32) {
    %c0_i32 = arith.constant 0 : i32
    %c0_i32_0 = arith.constant 0 : i32
    %c0_i32_1 = arith.constant 0 : i32
    return %c0_i32, %c0_i32_0 : i32, i32
  }
  func.func @transform_3(%arg0: i32) -> (i32, i32) {
    %c0_i32 = arith.constant 0 : i32
    %c0_i32_0 = arith.constant 0 : i32
    %c0_i32_1 = arith.constant 0 : i32
    return %c0_i32, %c0_i32_0 : i32, i32
  }
  func.func @transform_4(%arg0: i32) -> (i32, i32) {
    %c0_i32 = arith.constant 0 : i32
    %c0_i32_0 = arith.constant 0 : i32
    return %arg0, %c0_i32 : i32, i32
  }
}

</mosaic_0001>

<llo_original>
// kernel: tpu_custom_call.1
$region0: #{tpu_custom_call.1}
  #allocation0 [shape = 'u32[]', space=smem, size = 0x4, offset = 0x4, fixed_abs, tag = 'smem constant byte address 0x4 - core index']
  #allocation1 [shape = 'u32[144,128]{1,0:T(1,128)}', space=vmem, size = 0x12000, scoped, tag = 'internal scratch']
  %s0 = inlined_call_operand.hbm [shape: f32[16,32], index: 0, kind: input, shape index: {}]
  %s1 = inlined_call_operand.hbm [shape: f32[8,32], index: 1, kind: input, shape index: {}]
  %s2 = inlined_call_operand.vmem [shape: f32[1,32], index: 2, kind: input, shape index: {}]
  %s3 = inlined_call_operand.vmem [shape: f32[1,32], index: 3, kind: input, shape index: {}]
  %s4 = inlined_call_operand.hbm [shape: f32[16,32], index: 4, kind: output, shape index: {}]
  %s5 = sld [smem:[#allocation0]]
  $region57: #{tpu_custom_call.1} parent=0
    _
  %s7 = ssub.s32 1, %s5
  %s8 = scalar_select 0, %s7, %s5
  $region1: #{tpu_custom_call.1} parent=0
    #allocation2 [shape = 'u8[8192]{0}', space=vmem, size = 0x2000, scoped, tag = 'input window, operand 0']
    #allocation3 [shape = 's32[2]{0}', space=sflag, size = 0x8, scoped, tag = 'scoped memory for tpu_custom_call.1']
    #allocation4 [shape = 's32[2]{0}', space=sflag, size = 0x8, scoped, tag = 'scoped memory for tpu_custom_call.1']
    #allocation5 [shape = 'u8[4096]{0}', space=vmem, size = 0x1000, scoped, tag = 'input window, operand 1, single buffered']
    #allocation6 [shape = 's32[1]{0}', space=sflag, size = 0x4, scoped, tag = 'scoped memory for tpu_custom_call.1']
    #allocation7 [shape = 'u8[8192]{0}', space=vmem, size = 0x2000, scoped, tag = 'output window, operand 0']
    %9 = vsyncpa [#allocation3], 0
    %s10 = scalar_lea.sflag [#allocation3], 1
    %11 = vsyncpa %s10, 0
    %12 = vsyncpa [#allocation6], 0
    %13 = vsyncpa [#allocation4], 0
    %s14 = scalar_lea.sflag [#allocation4], 1
    %15 = vsyncpa %s14, 0
    loop: start=0, step=1, limit=4
    $region2: #{tpu_custom_call.1} parent=1 // loop_pre_header
      _
    $region3: #{tpu_custom_call.1} parent=1 // loop_header
      %s17 = sphi 0, %s21
      %p18 = scmp.ge.s32.totalorder %s17, 4
      %s27 = sphi 0, %s29
      %s30 = sphi 0, %s27
      %s31 = sphi 0, %s30
      %s47 = sphi 0, %s31
      %s51 = sphi 0, %s51
      %s53 = sphi 0, %s51
      %s54 = sphi 0, %s53
      %s68 = sphi 0, %s54
      %s72 = sphi 0, %s72
      %s74 = sphi 0, %s72
      %s75 = sphi 0, %s74
      %s89 = sphi 0, %s75
      %s93 = sphi 0, %s93
      %s95 = sphi 0, %s93
      %s96 = sphi 0, %s95
      %s110 = sphi 0, %s96
      %s116 = sphi 0, %s118
      %s119 = sphi 0, %s116
      %s120 = sphi 0, %s119
      %s136 = sphi 0, %s120
    $region4: #{tpu_custom_call.1} parent=1 // loop_header_branch
      %20 = sbr.rel (%p18) target = $region8
    $region5: #{tpu_custom_call.1} parent=1 // loop_body
      %s22 = ssub.s32 %s17, 1
      %s23 = ssub.s32 %s17, 2
      %s24 = sadd.s32 %s17, 1
      %s25 = ssub.s32 %s17, %s24
      %p26 = scmp.eq.s32.totalorder %s25, 0
      %s28 = sadd.s32 %s27, 1
      %s29 = scalar_select %p26, %s27, %s28
      %p32 = pneg %p26
      %p33 = scmp.eq.s32.totalorder %s17, 1
      %p34 = por %p32, %p33
      %p35 = scmp.ne.s32.totalorder %s27, %s30
      %p36 = scmp.eq.s32.totalorder %s17, 0
      %p37 = por %p35, %p36
      %p38 = scmp.ne.s32.totalorder %s27, %s30
      %p39 = scmp.eq.s32.totalorder %s22, 1
      %p40 = por %p38, %p39
      %p41 = scmp.ne.s32.totalorder %s30, %s31
      %p42 = scmp.eq.s32.totalorder %s22, 0
      %p43 = por %p41, %p42
      %p44 = scmp.ne.s32.totalorder %s30, %s31
      %p45 = scmp.eq.s32.totalorder %s23, 1
      %p46 = por %p44, %p45
      %p48 = scmp.ne.s32.totalorder %s31, %s47
      %p49 = scmp.eq.s32.totalorder %s23, 0
      %p50 = por %p48, %p49
      %s52 = sadd.s32 %s51, 1
      %p55 = scmp.eq.s32.totalorder %s17, 1
      %p56 = scmp.ne.s32.totalorder %s51, %s53
      %p57 = scmp.eq.s32.totalorder %s17, 0
      %p58 = por %p56, %p57
      %p59 = scmp.ne.s32.totalorder %s51, %s53
      %p60 = scmp.eq.s32.totalorder %s22, 1
      %p61 = por %p59, %p60
      %p62 = scmp.ne.s32.totalorder %s53, %s54
      %p63 = scmp.eq.s32.totalorder %s22, 0
      %p64 = por %p62, %p63
      %p65 = scmp.ne.s32.totalorder %s53, %s54
      %p66 = scmp.eq.s32.totalorder %s23, 1
      %p67 = por %p65, %p66
      %p69 = scmp.ne.s32.totalorder %s54, %s68
      %p70 = scmp.eq.s32.totalorder %s23, 0
      %p71 = por %p69, %p70
      %s73 = sadd.s32 %s72, 1
      %p76 = scmp.eq.s32.totalorder %s17, 1
      %p77 = scmp.ne.s32.totalorder %s72, %s74
      %p78 = scmp.eq.s32.totalorder %s17, 0
      %p79 = por %p77, %p78
      %p80 = scmp.ne.s32.totalorder %s72, %s74
      %p81 = scmp.eq.s32.totalorder %s22, 1
      %p82 = por %p80, %p81
      %p83 = scmp.ne.s32.totalorder %s74, %s75
      %p84 = scmp.eq.s32.totalorder %s22, 0
      %p85 = por %p83, %p84
      %p86 = scmp.ne.s32.totalorder %s74, %s75
      %p87 = scmp.eq.s32.totalorder %s23, 1
      %p88 = por %p86, %p87
      %p90 = scmp.ne.s32.totalorder %s75, %s89
      %p91 = scmp.eq.s32.totalorder %s23, 0
      %p92 = por %p90, %p91
      %s94 = sadd.s32 %s93, 1
      %p97 = scmp.eq.s32.totalorder %s17, 1
      %p98 = scmp.ne.s32.totalorder %s93, %s95
      %p99 = scmp.eq.s32.totalorder %s17, 0
      %p100 = por %p98, %p99
      %p101 = scmp.ne.s32.totalorder %s93, %s95
      %p102 = scmp.eq.s32.totalorder %s22, 1
      %p103 = por %p101, %p102
      %p104 = scmp.ne.s32.totalorder %s95, %s96
      %p105 = scmp.eq.s32.totalorder %s22, 0
      %p106 = por %p104, %p105
      %p107 = scmp.ne.s32.totalorder %s95, %s96
      %p108 = scmp.eq.s32.totalorder %s23, 1
      %p109 = por %p107, %p108
      %p111 = scmp.ne.s32.totalorder %s96, %s110
      %p112 = scmp.eq.s32.totalorder %s23, 0
      %p113 = por %p111, %p112
      %s114 = ssub.s32 %s17, %s24
      %p115 = scmp.eq.s32.totalorder %s114, 0
      %s117 = sadd.s32 %s116, 1
      %s118 = scalar_select %p115, %s116, %s117
      %p121 = pneg %p115
      %p122 = scmp.eq.s32.totalorder %s17, 1
      %p123 = por %p121, %p122
      %p124 = scmp.ne.s32.totalorder %s116, %s119
      %p125 = scmp.eq.s32.totalorder %s17, 0
      %p126 = por %p124, %p125
      %p127 = scmp.ne.s32.totalorder %s116, %s119
      %p128 = scmp.eq.s32.totalorder %s22, 1
      %p129 = por %p127, %p128
      %p130 = scmp.ne.s32.totalorder %s119, %s120
      %p131 = scmp.eq.s32.totalorder %s22, 0
      %p132 = por %p130, %p131
      %p133 = scmp.ne.s32.totalorder %s119, %s120
      %p134 = scmp.eq.s32.totalorder %s23, 1
      %p135 = por %p133, %p134
      %p137 = scmp.ne.s32.totalorder %s120, %s136
      %p138 = scmp.eq.s32.totalorder %s23, 0
      %p139 = por %p137, %p138
      %p140 = scmp.le.s32.totalorder 1, %s17
      %p141 = scmp.lt.s32.totalorder %s17, 3
      %p142 = pnand %p140, %p141
      %p143 = pneg %p142
      // Predicated region
      $region9: #{tpu_custom_call.1} parent=5 // pred_check
        _
      $region10: #{tpu_custom_call.1} parent=5 // pred_check_branch
        %145 = sbr.rel (%p142) target = $region12
      $region11: #{tpu_custom_call.1} parent=5 // pred_region
        %s146 = ssub.s32 %s17, 1
        // Predicated region
        $region13: #{tpu_custom_call.1} parent=11 // pred_check
          %p147 = pneg %p64
        $region14: #{tpu_custom_call.1} parent=11 // pred_check_branch
          %149 = sbr.rel (%p147) target = $region16
        $region15: #{tpu_custom_call.1} parent=11 // pred_region
          %s151 = ssub.s32 128, 128
          %152 = vsyncadd [#allocation6], %s151
          %s154 = sshll.u32 [#allocation5], 4
          %s155 = int_to_ptr.vmem [resolvable:$true] %s154
          %157 = dma.hbm_to_vmem [thread:$0]  %s1, 128, %s155, [#allocation6]
        $region16: #{tpu_custom_call.1} parent=11 // pred_fallthru
          _
        // Predicated region
        $region17: #{tpu_custom_call.1} parent=11 // pred_check
          %p158 = pneg %p85
        $region18: #{tpu_custom_call.1} parent=11 // pred_check_branch
          %160 = sbr.rel (%p158) target = $region20
        $region19: #{tpu_custom_call.1} parent=11 // pred_region
          _
        $region20: #{tpu_custom_call.1} parent=11 // pred_fallthru
          _
        // Predicated region
        $region21: #{tpu_custom_call.1} parent=11 // pred_check
          %p161 = pneg %p106
        $region22: #{tpu_custom_call.1} parent=11 // pred_check_branch
          %163 = sbr.rel (%p161) target = $region24
        $region23: #{tpu_custom_call.1} parent=11 // pred_region
          _
        $region24: #{tpu_custom_call.1} parent=11 // pred_fallthru
          _
      $region12: #{tpu_custom_call.1} parent=5 // pred_fallthru
        _
      %p164 = scmp.lt.s32.totalorder %s17, 2
      // Predicated region
      $region25: #{tpu_custom_call.1} parent=5 // pred_check
        %p165 = pneg %p164
      $region26: #{tpu_custom_call.1} parent=5 // pred_check_branch
        %167 = sbr.rel (%p165) target = $region28
      $region27: #{tpu_custom_call.1} parent=5 // pred_region
        // Predicated region
        $region29: #{tpu_custom_call.1} parent=27 // pred_check
          %p168 = pneg %p37
        $region30: #{tpu_custom_call.1} parent=27 // pred_check_branch
          %170 = sbr.rel (%p168) target = $region32
        $region31: #{tpu_custom_call.1} parent=27 // pred_region
          %s171 = sand.u32 %s27, 1
          %s172 = scalar_lea.sflag [#allocation3], %s171
          %s173 = sand.u32 %s27, 1
          %s174 = smul.addr %s173, 8
          %s175 = scalar_lea.vmem [#allocation2], %s174
          %s177 = ssub.s32 128, 128
          %178 = vsyncadd %s172, %s177
          %s179 = smul.addr %s17, 128
          %s180 = scalar_lea.hbm %s0, %s179
          %s182 = sshll.u32 %s175, 4
          %s183 = int_to_ptr.vmem [resolvable:$true] %s182
          %185 = dma.hbm_to_vmem [thread:$0]  %s180, 128, %s183, %s172
        $region32: #{tpu_custom_call.1} parent=27 // pred_fallthru
          _
      $region28: #{tpu_custom_call.1} parent=5 // pred_fallthru
        _
      %p186 = scmp.le.s32.totalorder 1, %s17
      %p187 = scmp.lt.s32.totalorder %s17, 3
      %p188 = pnand %p186, %p187
      %p189 = pneg %p188
      // Predicated region
      $region33: #{tpu_custom_call.1} parent=5 // pred_check
        _
      $region34: #{tpu_custom_call.1} parent=5 // pred_check_branch
        %191 = sbr.rel (%p188) target = $region36
      $region35: #{tpu_custom_call.1} parent=5 // pred_region
        %s192 = ssub.s32 %s17, 1
        %s193 = sand.u32 %s30, 1
        %s194 = scalar_lea.sflag [#allocation3], %s193
        %s195 = sand.u32 %s30, 1
        %s196 = smul.addr %s195, 8
        %s197 = scalar_lea.vmem [#allocation2], %s196
        // Predicated region
        $region37: #{tpu_custom_call.1} parent=35 // pred_check
          %p198 = pneg %p43
        $region38: #{tpu_custom_call.1} parent=35 // pred_check_branch
          %200 = sbr.rel (%p198) target = $region40
        $region39: #{tpu_custom_call.1} parent=35 // pred_region
          %201 = dma.done %s194, 128
        $region40: #{tpu_custom_call.1} parent=35 // pred_fallthru
          _
        // Predicated region
        $region41: #{tpu_custom_call.1} parent=35 // pred_check
          %p202 = pneg %p64
        $region42: #{tpu_custom_call.1} parent=35 // pred_check_branch
          %204 = sbr.rel (%p202) target = $region44
        $region43: #{tpu_custom_call.1} parent=35 // pred_region
          %205 = dma.done [#allocation6], 128
        $region44: #{tpu_custom_call.1} parent=35 // pred_fallthru
          _
        %s206 = sand.u32 %s30, 1
        %s207 = scalar_lea.sflag [#allocation3], %s206
        %s208 = sand.u32 %s30, 1
        %s209 = smul.addr %s208, 8
        %s210 = scalar_lea.vmem [#allocation2], %s209
        %p211 = pneg %p43
        %p212 = pneg %p40
        %p213 = pneg %p64
        %p214 = pneg %p61
        %p215 = pneg %p85
        %p216 = pneg %p82
        %p217 = pneg %p106
        %p218 = pneg %p103
        %p219 = pneg %p132
        %p220 = pneg %p129
        %s221 = sand.u32 %s119, 1
        %s222 = scalar_lea.sflag [#allocation4], %s221
        %s223 = sand.u32 %s119, 1
        %s224 = smul.addr %s223, 8
        %s225 = scalar_lea.vmem [#allocation7], %s224
        %v226 = vld [vmem:[%s197] sm:$0xff]
        %v227 = vld [vmem:[#allocation5] sm:$0xff]
        %v228 = vadd.f32 %v226, %v227
        %v229 = vld [vmem:[%s2] sm:$0x1]
        %v230 = vld [vmem:[%s3] sm:$0x1]
        %vm231 = vcmask 261120
        %v232 = vsel %vm231, %v228, 0.0
        %233 = vadd.xlane.f32.xlu0 %v232
        %v234 = vpop.xlane.xlu0 %233
        %v235 = vrcp.pop 32.0
        %v236 = vmul.f32 %v234, %v235
        %v237 = vsub.f32 %v228, %v236
        %v238 = vmul.f32 %v237, %v237
        %v239 = vsel %vm231, %v238, 0.0
        %240 = vadd.xlane.f32.xlu0 %v239
        %v241 = vpop.xlane.xlu0 %240
        %v242 = vmul.f32 %v241, %v235
        %v243 = vadd.f32 %v242, 1e-12
        %v244 = vrsqrt.pop %v243
        %v245 = vmul.f32 %v237, %v244
        %v247 = vlaneseq
        %v248 = vshrl.u32 %v247, 7
        %v249 = vsub.s32 0, %v248
        %v250 = vrot.slane %v229, %v249
        %v252 = vmul.f32 %v245, %v250
        %v254 = vlaneseq
        %v255 = vshrl.u32 %v254, 7
        %v256 = vsub.s32 0, %v255
        %v257 = vrot.slane %v230, %v256
        %v259 = vadd.f32 %v252, %v257
        %260 = vst.msk [vmem:[%s225] sm:$0xff] %vm231, %v259
        %s261 = sand.u32 %s119, 1
        %s262 = scalar_lea.sflag [#allocation4], %s261
        %s263 = sand.u32 %s119, 1
        %s264 = smul.addr %s263, 8
        %s265 = scalar_lea.vmem [#allocation7], %s264
        // Predicated region
        $region45: #{tpu_custom_call.1} parent=35 // pred_check
          %p266 = pneg %p129
        $region46: #{tpu_custom_call.1} parent=35 // pred_check_branch
          %268 = sbr.rel (%p266) target = $region48
        $region47: #{tpu_custom_call.1} parent=35 // pred_region
          %s270 = ssub.s32 128, 128
          %271 = vsyncadd %s262, %s270
          %s272 = smul.addr %s22, 128
          %s273 = scalar_lea.hbm %s4, %s272
          %s275 = sshll.u32 %s265, 4
          %s276 = int_to_ptr.vmem [resolvable:$true] %s275
          %278 = dma.vmem_to_hbm [thread:$0]  %s276, 128, %s273, %s262
        $region48: #{tpu_custom_call.1} parent=35 // pred_fallthru
          _
      $region36: #{tpu_custom_call.1} parent=5 // pred_fallthru
        _
      %p279 = scmp.le.s32.totalorder 2, %s17
      // Predicated region
      $region49: #{tpu_custom_call.1} parent=5 // pred_check
        %p280 = pneg %p279
      $region50: #{tpu_custom_call.1} parent=5 // pred_check_branch
        %282 = sbr.rel (%p280) target = $region52
      $region51: #{tpu_custom_call.1} parent=5 // pred_region
        %s283 = ssub.s32 %s17, 2
        // Predicated region
        $region53: #{tpu_custom_call.1} parent=51 // pred_check
          %p284 = pneg %p135
        $region54: #{tpu_custom_call.1} parent=51 // pred_check_branch
          %286 = sbr.rel (%p284) target = $region56
        $region55: #{tpu_custom_call.1} parent=51 // pred_region
          %s287 = sand.u32 %s120, 1
          %s288 = scalar_lea.sflag [#allocation4], %s287
          %s289 = sand.u32 %s120, 1
          %s290 = smul.addr %s289, 8
          %s291 = scalar_lea.vmem [#allocation7], %s290
          %292 = dma.done %s288, 128
        $region56: #{tpu_custom_call.1} parent=51 // pred_fallthru
          _
      $region52: #{tpu_custom_call.1} parent=5 // pred_fallthru
        _
    $region6: #{tpu_custom_call.1} parent=1 // loop_footer
      %s21 = sadd.s32 1, %s17
    $region7: #{tpu_custom_call.1} parent=1 // loop_footer_branch
      %16 = sbr.rel target = $region3
    $region8: #{tpu_custom_call.1} parent=1 // loop_exit
      _
    %293 = vsyncpa [#allocation3], 1
    %s294 = scalar_lea.sflag [#allocation3], 1
    %295 = vsyncpa %s294, 1
    %296 = vsyncpa [#allocation6], 1
    %297 = vsyncpa [#allocation4], 1
    %s298 = scalar_lea.sflag [#allocation4], 1
    %299 = vsyncpa %s298, 1

</llo_original>
